<compile_context>
chip_gen: v6e
topology: v6e:2x2x1
jax: 0.10.0
libtpu: 0.0.40
codegen_flags: <defaults>
</compile_context>

<pallas_src>
import jax
import jax.numpy as jnp
from jax.experimental import pallas as pl
from jax.experimental.pallas import tpu as pltpu


def policy_kernel(x_ref, w1_ref, b1_ref, wd_ref, bd_ref, o_ref):
    # Transposed, lane-dense layout: batch on the lane (last) axis.
    #   x_ref : (4, TB)    w1_ref: (128, 4)   b1_ref: (128, 1)
    #   wd_ref: (1, 128)   bd_ref: (1, 1)     o_ref : (2, TB)
    x = x_ref[...]                                    # f32 (4, TB)
    w1 = w1_ref[...]                                  # (128, 4)

    # affine1 (K=4) on the VPU: 4 broadcast multiply-adds (outer products),
    # skipping an MXU matmul that would use <4% of the MXU K dimension.
    h = b1_ref[...] + w1[:, 0:1] * x[0:1, :]          # (128, TB)
    for k in range(1, 4):
        h = h + w1[:, k:k + 1] * x[k:k + 1, :]

    # dropout(p=0.6): identity in eval mode.
    # TODO(synk): training-mode dropout (Bernoulli mask + 1/(1-p) rescale).
    h = jnp.maximum(h, 0.0)                           # ReLU

    # affine2 folded to a single logit difference d = s1 - s0 (w_diff/b_diff were
    # folded in the wrapper), so the 2-class softmax becomes a sigmoid:
    #   p1 = exp(s1)/(exp(s0)+exp(s1)) = sigmoid(s1 - s0),  p0 = 1 - p1
    d = jnp.dot(wd_ref[...], h, preferred_element_type=jnp.float32) + bd_ref[...]
    p1 = 1.0 / (1.0 + jnp.exp(-d))                    # (1, TB)
    p0 = 1.0 - p1                                     # (1, TB)

    # Assemble the (2, TB) lane-dense output block with a sublane-index select
    # (avoids concatenation / single-sublane masked stores).
    rows = jax.lax.broadcasted_iota(jnp.int32, (2,) + d.shape[1:], 0)
    o_ref[...] = jnp.where(rows == 0, p0, p1).astype(o_ref.dtype)


def policy_forward(x, w1, b1, w2, b2, *, tile_b=1024):
    """x: (B, 4); w1: (4, 128); b1: (128,); w2: (128, 2); b2: (2,) -> (B, 2)."""
    B = x.shape[0]

    # Layout plumbing (outside the kernel): batch onto the lane axis, fold the
    # 2-class softmax into a logit-difference matvec.
    x_t = x.T                                         # (4, B)
    w1_t = w1.T                                       # (128, 4)
    b1_c = b1.reshape(-1, 1)                          # (128, 1)
    w_diff = (w2[:, 1] - w2[:, 0]).reshape(1, -1)     # (1, 128)
    b_diff = (b2[1] - b2[0]).reshape(1, 1)            # (1, 1)

    if B <= tile_b:
        tb = B                                        # full-extent block (exempt from 128 rule)
    else:
        tb = tile_b
        assert tb % 128 == 0, "tile_b must be a multiple of 128 when tiling the batch"
    grid = (pl.cdiv(B, tb),)

    # Per-step VMEM footprint (x tile + h intermediate + out tile, double-buffered
    # x/out) is well under v7x's 32 MiB default scoped VMEM for tile_b <= 4096,
    # so no vmem_limit_bytes override is needed on any generation.
    out_t = pl.pallas_call(
        policy_kernel,
        out_shape=jax.ShapeDtypeStruct((2, B), jnp.float32),
        grid=grid,
        in_specs=[
            pl.BlockSpec((4, tb), lambda i: (0, i)),        # x tile (streamed)
            pl.BlockSpec((128, 4), lambda i: (0, 0)),       # weights: resident
            pl.BlockSpec((128, 1), lambda i: (0, 0)),
            pl.BlockSpec((1, 128), lambda i: (0, 0)),
            pl.BlockSpec((1, 1), lambda i: (0, 0)),
        ],
        out_specs=pl.BlockSpec((2, tb), lambda i: (0, i)),  # lane-dense output
        compiler_params=pltpu.CompilerParams(
            dimension_semantics=("parallel",)),             # megacore on v7x
    )(x_t, w1_t, b1_c, w_diff, b_diff)

    return out_t.T                                    # back to (B, 2)


def init_params(key):
    # Deterministic synthetic init (shapes match nn.Linear(4,128), nn.Linear(128,2)).
    k1, k2, k3, k4 = jax.random.split(key, 4)
    lim1 = 1.0 / jnp.sqrt(4.0)
    lim2 = 1.0 / jnp.sqrt(128.0)
    w1 = jax.random.uniform(k1, (4, 128), jnp.float32, -lim1, lim1)
    b1 = jax.random.uniform(k2, (128,), jnp.float32, -lim1, lim1)
    w2 = jax.random.uniform(k3, (128, 2), jnp.float32, -lim2, lim2)
    b2 = jax.random.uniform(k4, (2,), jnp.float32, -lim2, lim2)
    return w1, b1, w2, b2


def reference_forward(x, w1, b1, w2, b2):
    h = jnp.maximum(x @ w1 + b1, 0.0)
    s = h @ w2 + b2
    return jax.nn.softmax(s, axis=1)


if __name__ == "__main__":
    key = jax.random.PRNGKey(0)
    kx, kp = jax.random.split(key)
    w1, b1, w2, b2 = init_params(kp)

    # Small case (B=8): single grid step, full-extent blocks.
    B = 8
    x = jax.random.normal(kx, (B, 4), jnp.float32)
    out = jax.block_until_ready(policy_forward(x, w1, b1, w2, b2))
    ref = reference_forward(x, w1, b1, w2, b2)
    assert out.shape == (B, 2)
    assert jnp.allclose(out, ref, atol=1e-5, rtol=1e-5)
    assert jnp.allclose(jnp.sum(out, axis=1), jnp.ones((B,)), atol=1e-5)

    # Tiled / pipelined path: 3 grid steps of 128 rows incl. a partial last tile.
    B2 = 320
    x2 = jax.random.normal(kx, (B2, 4), jnp.float32)
    out2 = jax.block_until_ready(policy_forward(x2, w1, b1, w2, b2, tile_b=128))
    ref2 = reference_forward(x2, w1, b1, w2, b2)
    assert out2.shape == (B2, 2)
    assert jnp.allclose(out2, ref2, atol=1e-5, rtol=1e-5)

    print("KERNEL_OK")
</pallas_src>

<mosaic_0001>
module attributes {stable_mosaic.version = 11 : i64} {
  func.func @policy_kernel(%arg0: i32, %arg1: memref<4x8xf32, #tpu.memory_space<vmem>>, %arg2: memref<128x4xf32, #tpu.memory_space<vmem>>, %arg3: memref<128x1xf32, #tpu.memory_space<vmem>>, %arg4: memref<1x128xf32, #tpu.memory_space<vmem>>, %arg5: memref<1x1xf32, #tpu.memory_space<vmem>>, %arg6: memref<2x8xf32, #tpu.memory_space<vmem>>) attributes {dimension_semantics = [#tpu.dimension_semantics<parallel>], iteration_bounds = array<i64: 1>, scalar_prefetch = 0 : i64, scratch_operands = 0 : i64, tpu.core_type = #tpu.core_type<tc>, window_params = [{transform_indices = @transform_0, window_bounds = array<i64: 4, 8>}, {pipeline_mode = #tpu.pipeline_mode<synchronous>, transform_indices = @transform_1, window_bounds = array<i64: 128, 4>}, {pipeline_mode = #tpu.pipeline_mode<synchronous>, transform_indices = @transform_2, window_bounds = array<i64: 128, 1>}, {pipeline_mode = #tpu.pipeline_mode<synchronous>, transform_indices = @transform_3, window_bounds = array<i64: 1, 128>}, {pipeline_mode = #tpu.pipeline_mode<synchronous>, transform_indices = @transform_4, window_bounds = array<i64: 1, 1>}, {transform_indices = @transform_5, window_bounds = array<i64: 2, 8>}]} {
    %c0 = arith.constant 0 : index
    %c0_0 = arith.constant 0 : index
    %0 = vector.load %arg1[%c0, %c0_0] : memref<4x8xf32, #tpu.memory_space<vmem>>, vector<4x8xf32>
    %c0_1 = arith.constant 0 : index
    %c0_2 = arith.constant 0 : index
    %1 = vector.load %arg2[%c0_1, %c0_2] : memref<128x4xf32, #tpu.memory_space<vmem>>, vector<128x4xf32>
    %c0_3 = arith.constant 0 : index
    %c0_4 = arith.constant 0 : index
    %2 = vector.load %arg3[%c0_3, %c0_4] : memref<128x1xf32, #tpu.memory_space<vmem>>, vector<128x1xf32>
    %3 = vector.extract_strided_slice %1 {offsets = [0, 0], sizes = [128, 1], strides = [1, 1]} : vector<128x4xf32> to vector<128x1xf32>
    %4 = vector.extract_strided_slice %0 {offsets = [0, 0], sizes = [1, 8], strides = [1, 1]} : vector<4x8xf32> to vector<1x8xf32>
    %5 = vector.broadcast %3 : vector<128x1xf32> to vector<128x8xf32>
    %6 = vector.broadcast %4 : vector<1x8xf32> to vector<128x8xf32>
    %7 = arith.mulf %5, %6 : vector<128x8xf32>
    %8 = vector.broadcast %2 : vector<128x1xf32> to vector<128x8xf32>
    %9 = arith.addf %8, %7 : vector<128x8xf32>
    %10 = vector.extract_strided_slice %1 {offsets = [0, 1], sizes = [128, 1], strides = [1, 1]} : vector<128x4xf32> to vector<128x1xf32>
    %11 = vector.extract_strided_slice %0 {offsets = [1, 0], sizes = [1, 8], strides = [1, 1]} : vector<4x8xf32> to vector<1x8xf32>
    %12 = vector.broadcast %10 : vector<128x1xf32> to vector<128x8xf32>
    %13 = vector.broadcast %11 : vector<1x8xf32> to vector<128x8xf32>
    %14 = arith.mulf %12, %13 : vector<128x8xf32>
    %15 = arith.addf %9, %14 : vector<128x8xf32>
    %16 = vector.extract_strided_slice %1 {offsets = [0, 2], sizes = [128, 1], strides = [1, 1]} : vector<128x4xf32> to vector<128x1xf32>
    %17 = vector.extract_strided_slice %0 {offsets = [2, 0], sizes = [1, 8], strides = [1, 1]} : vector<4x8xf32> to vector<1x8xf32>
    %18 = vector.broadcast %16 : vector<128x1xf32> to vector<128x8xf32>
    %19 = vector.broadcast %17 : vector<1x8xf32> to vector<128x8xf32>
    %20 = arith.mulf %18, %19 : vector<128x8xf32>
    %21 = arith.addf %15, %20 : vector<128x8xf32>
    %22 = vector.extract_strided_slice %1 {offsets = [0, 3], sizes = [128, 1], strides = [1, 1]} : vector<128x4xf32> to vector<128x1xf32>
    %23 = vector.extract_strided_slice %0 {offsets = [3, 0], sizes = [1, 8], strides = [1, 1]} : vector<4x8xf32> to vector<1x8xf32>
    %24 = vector.broadcast %22 : vector<128x1xf32> to vector<128x8xf32>
    %25 = vector.broadcast %23 : vector<1x8xf32> to vector<128x8xf32>
    %26 = arith.mulf %24, %25 : vector<128x8xf32>
    %27 = arith.addf %21, %26 : vector<128x8xf32>
    %cst = arith.constant 0.000000e+00 : f32
    %28 = vector.broadcast %cst : f32 to vector<128x8xf32>
    %29 = arith.maximumf %27, %28 : vector<128x8xf32>
    %c0_5 = arith.constant 0 : index
    %c0_6 = arith.constant 0 : index
    %30 = vector.load %arg4[%c0_5, %c0_6] : memref<1x128xf32, #tpu.memory_space<vmem>>, vector<1x128xf32>
    %cst_7 = arith.constant dense<0.000000e+00> : vector<1x8xf32>
    %31 = tpu.matmul %30, %29, %cst_7 {dimension_numbers = #tpu.dot_dimension_numbers<[1], [0], [0], [1], [0, 0, 1, 1], [], []>} : vector<1x128xf32>, vector<128x8xf32>, vector<1x8xf32> -> vector<1x8xf32>
    %c0_8 = arith.constant 0 : index
    %c0_9 = arith.constant 0 : index
    %32 = vector.load %arg5[%c0_8, %c0_9] : memref<1x1xf32, #tpu.memory_space<vmem>>, vector<1x1xf32>
    %33 = vector.broadcast %32 : vector<1x1xf32> to vector<1x8xf32>
    %34 = arith.addf %31, %33 : vector<1x8xf32>
    %cst_10 = arith.constant 0.000000e+00 : f32
    %35 = vector.broadcast %cst_10 : f32 to vector<1x8xf32>
    %36 = arith.subf %35, %34 : vector<1x8xf32>
    %37 = math.exp %36 : vector<1x8xf32>
    %cst_11 = arith.constant 1.000000e+00 : f32
    %38 = vector.broadcast %cst_11 : f32 to vector<1x8xf32>
    %39 = arith.addf %38, %37 : vector<1x8xf32>
    %cst_12 = arith.constant 1.000000e+00 : f32
    %40 = vector.broadcast %cst_12 : f32 to vector<1x8xf32>
    %41 = arith.divf %40, %39 : vector<1x8xf32>
    %cst_13 = arith.constant 1.000000e+00 : f32
    %42 = vector.broadcast %cst_13 : f32 to vector<1x8xf32>
    %43 = arith.subf %42, %41 : vector<1x8xf32>
    %44 = tpu.iota {dimensions = array<i32: 0>} : vector<2x8xi32>
    %c0_i32 = arith.constant 0 : i32
    %45 = vector.broadcast %c0_i32 : i32 to vector<2x8xi32>
    %46 = arith.cmpi eq, %44, %45 : vector<2x8xi32>
    %47 = vector.shape_cast %43 : vector<1x8xf32> to vector<1x8xf32>
    %48 = vector.broadcast %47 : vector<1x8xf32> to vector<2x8xf32>
    %49 = vector.shape_cast %41 : vector<1x8xf32> to vector<1x8xf32>
    %50 = vector.broadcast %49 : vector<1x8xf32> to vector<2x8xf32>
    %51 = arith.select %46, %48, %50 : vector<2x8xi1>, vector<2x8xf32>
    %c0_14 = arith.constant 0 : index
    %c0_15 = arith.constant 0 : index
    %52 = vector.load %arg6[%c0_14, %c0_15] : memref<2x8xf32, #tpu.memory_space<vmem>>, vector<2x8xf32>
    tpu.vector_store %arg6[%c0_14, %c0_15], %51 {strides = array<i32>} : memref<2x8xf32, #tpu.memory_space<vmem>>, vector<2x8xf32>,
    return
  }
  func.func @transform_0(%arg0: i32) -> (i32, i32) {
    %c0_i32 = arith.constant 0 : i32
    %c0_i32_0 = arith.constant 0 : i32
    return %c0_i32, %arg0 : i32, i32
  }
  func.func @transform_1(%arg0: i32) -> (i32, i32) {
    %c0_i32 = arith.constant 0 : i32
    %c0_i32_0 = arith.constant 0 : i32
    %c0_i32_1 = arith.constant 0 : i32
    return %c0_i32, %c0_i32_0 : i32, i32
  }
  func.func @transform_2(%arg0: i32) -> (i32, i32) {
    %c0_i32 = arith.constant 0 : i32
    %c0_i32_0 = arith.constant 0 : i32
    %c0_i32_1 = arith.constant 0 : i32
    return %c0_i32, %c0_i32_0 : i32, i32
  }
  func.func @transform_3(%arg0: i32) -> (i32, i32) {
    %c0_i32 = arith.constant 0 : i32
    %c0_i32_0 = arith.constant 0 : i32
    %c0_i32_1 = arith.constant 0 : i32
    return %c0_i32, %c0_i32_0 : i32, i32
  }
  func.func @transform_4(%arg0: i32) -> (i32, i32) {
    %c0_i32 = arith.constant 0 : i32
    %c0_i32_0 = arith.constant 0 : i32
    %c0_i32_1 = arith.constant 0 : i32
    return %c0_i32, %c0_i32_0 : i32, i32
  }
  func.func @transform_5(%arg0: i32) -> (i32, i32) {
    %c0_i32 = arith.constant 0 : i32
    %c0_i32_0 = arith.constant 0 : i32
    return %c0_i32, %arg0 : i32, i32
  }
}

</mosaic_0001>

<llo_original>
// kernel: tpu_custom_call.1
$region0: #{tpu_custom_call.1}
  #allocation0 [shape = 'u32[]', space=smem, size = 0x4, offset = 0x4, fixed_abs, tag = 'smem constant byte address 0x4 - core index']
  #allocation1 [shape = 'u32[144,128]{1,0:T(1,128)}', space=vmem, size = 0x12000, scoped, tag = 'internal scratch']
  #allocation2 [shape = 'f32[1,1]{1,0:T(1,128)S(1)}', space=vmem, size = 0x200, scoped, tag = 'scoped memory for tpu_custom_call.1']
  %s0 = inlined_call_operand.vmem [shape: f32[4,8], index: 0, kind: input, shape index: {}]
  %s1 = inlined_call_operand.vmem [shape: f32[128,4], index: 1, kind: input, shape index: {}]
  %s2 = inlined_call_operand.vmem [shape: f32[128,1], index: 2, kind: input, shape index: {}]
  %s3 = inlined_call_operand.vmem [shape: f32[1,128], index: 3, kind: input, shape index: {}]
  %s4 = inlined_call_operand.<no memory space> [shape: f32[1,1], index: 4, kind: input, shape index: {}]
  %s5 = inlined_call_operand.hbm [shape: f32[2,8], index: 5, kind: output, shape index: {}]
  %s6 = sld [smem:[#allocation0]]
  $region30: #{tpu_custom_call.1} parent=0
    _
  %s8 = ssub.s32 1, %s6
  %s9 = scalar_select 0, %s8, %s6
  %v10 = vstv %s4
  %11 = vst [vmem:[#allocation2] sm:$0x1] %v10
  $region1: #{tpu_custom_call.1} parent=0
    #allocation3 [shape = 'u8[1024]{0}', space=vmem, size = 0x400, scoped, tag = 'output window, operand 0, single buffered']
    #allocation4 [shape = 's32[1]{0}', space=sflag, size = 0x4, scoped, tag = 'scoped memory for tpu_custom_call.1']
    %12 = vsyncpa [#allocation4], 0
    // Predicated region
    $region2: #{tpu_custom_call.1} parent=1 // pred_check
      _
    $region3: #{tpu_custom_call.1} parent=1 // pred_check_branch
      %14 = sbr.rel (0) target = $region5
    $region4: #{tpu_custom_call.1} parent=1 // pred_region
      _
    $region5: #{tpu_custom_call.1} parent=1 // pred_fallthru
      _
    // Predicated region
    $region6: #{tpu_custom_call.1} parent=1 // pred_check
      _
    $region7: #{tpu_custom_call.1} parent=1 // pred_check_branch
      %16 = sbr.rel (0) target = $region9
    $region8: #{tpu_custom_call.1} parent=1 // pred_region
      _
    $region9: #{tpu_custom_call.1} parent=1 // pred_fallthru
      _
    // Predicated region
    $region10: #{tpu_custom_call.1} parent=1 // pred_check
      _
    $region11: #{tpu_custom_call.1} parent=1 // pred_check_branch
      %18 = sbr.rel (0) target = $region13
    $region12: #{tpu_custom_call.1} parent=1 // pred_region
      _
    $region13: #{tpu_custom_call.1} parent=1 // pred_fallthru
      _
    // Predicated region
    $region14: #{tpu_custom_call.1} parent=1 // pred_check
      _
    $region15: #{tpu_custom_call.1} parent=1 // pred_check_branch
      %20 = sbr.rel (0) target = $region17
    $region16: #{tpu_custom_call.1} parent=1 // pred_region
      _
    $region17: #{tpu_custom_call.1} parent=1 // pred_fallthru
      _
    // Predicated region
    $region18: #{tpu_custom_call.1} parent=1 // pred_check
      _
    $region19: #{tpu_custom_call.1} parent=1 // pred_check_branch
      %22 = sbr.rel (0) target = $region21
    $region20: #{tpu_custom_call.1} parent=1 // pred_region
      _
    $region21: #{tpu_custom_call.1} parent=1 // pred_fallthru
      _
    %v23 = vld [vmem:[%s0] sm:$0xf]
    %v24 = vld [vmem:[%s1] sm:$0xff]
    %v25 = vld [vmem:[%s1 + $0x8] sm:$0xff]
    %v26 = vld [vmem:[%s1 + $0x10] sm:$0xff]
    %v27 = vld [vmem:[%s1 + $0x18] sm:$0xff]
    %v28 = vld [vmem:[%s1 + $0x20] sm:$0xff]
    %v29 = vld [vmem:[%s1 + $0x28] sm:$0xff]
    %v30 = vld [vmem:[%s1 + $0x30] sm:$0xff]
    %v31 = vld [vmem:[%s1 + $0x38] sm:$0xff]
    %v32 = vld [vmem:[%s1 + $0x40] sm:$0xff]
    %v33 = vld [vmem:[%s1 + $0x48] sm:$0xff]
    %v34 = vld [vmem:[%s1 + $0x50] sm:$0xff]
    %v35 = vld [vmem:[%s1 + $0x58] sm:$0xff]
    %v36 = vld [vmem:[%s1 + $0x60] sm:$0xff]
    %v37 = vld [vmem:[%s1 + $0x68] sm:$0xff]
    %v38 = vld [vmem:[%s1 + $0x70] sm:$0xff]
    %v39 = vld [vmem:[%s1 + $0x78] sm:$0xff]
    %v40 = vld [vmem:[%s2] sm:$0xff]
    %v41 = vld [vmem:[%s2 + $0x8] sm:$0xff]
    %v42 = vld [vmem:[%s2 + $0x10] sm:$0xff]
    %v43 = vld [vmem:[%s2 + $0x18] sm:$0xff]
    %v44 = vld [vmem:[%s2 + $0x20] sm:$0xff]
    %v45 = vld [vmem:[%s2 + $0x28] sm:$0xff]
    %v46 = vld [vmem:[%s2 + $0x30] sm:$0xff]
    %v47 = vld [vmem:[%s2 + $0x38] sm:$0xff]
    %v48 = vld [vmem:[%s2 + $0x40] sm:$0xff]
    %v49 = vld [vmem:[%s2 + $0x48] sm:$0xff]
    %v50 = vld [vmem:[%s2 + $0x50] sm:$0xff]
    %v51 = vld [vmem:[%s2 + $0x58] sm:$0xff]
    %v52 = vld [vmem:[%s2 + $0x60] sm:$0xff]
    %v53 = vld [vmem:[%s2 + $0x68] sm:$0xff]
    %v54 = vld [vmem:[%s2 + $0x70] sm:$0xff]
    %v55 = vld [vmem:[%s2 + $0x78] sm:$0xff]
    %57 = vset.pattern.permute.xlu0 0
    %58 = vperm.xlu0 %57, %v24
    %v59 = vpop.permute.xlu0 %58
    %62 = vset.pattern.permute.xlu0 0
    %63 = vperm.xlu0 %62, %v25
    %v64 = vpop.permute.xlu0 %63
    %67 = vset.pattern.permute.xlu0 0
    %68 = vperm.xlu0 %67, %v26
    %v69 = vpop.permute.xlu0 %68
    %72 = vset.pattern.permute.xlu0 0
    %73 = vperm.xlu0 %72, %v27
    %v74 = vpop.permute.xlu0 %73
    %77 = vset.pattern.permute.xlu0 0
    %78 = vperm.xlu0 %77, %v28
    %v79 = vpop.permute.xlu0 %78
    %82 = vset.pattern.permute.xlu0 0
    %83 = vperm.xlu0 %82, %v29
    %v84 = vpop.permute.xlu0 %83
    %87 = vset.pattern.permute.xlu0 0
    %88 = vperm.xlu0 %87, %v30
    %v89 = vpop.permute.xlu0 %88
    %92 = vset.pattern.permute.xlu0 0
    %93 = vperm.xlu0 %92, %v31
    %v94 = vpop.permute.xlu0 %93
    %97 = vset.pattern.permute.xlu0 0
    %98 = vperm.xlu0 %97, %v32
    %v99 = vpop.permute.xlu0 %98
    %102 = vset.pattern.permute.xlu0 0
    %103 = vperm.xlu0 %102, %v33
    %v104 = vpop.permute.xlu0 %103
    %107 = vset.pattern.permute.xlu0 0
    %108 = vperm.xlu0 %107, %v34
    %v109 = vpop.permute.xlu0 %108
    %112 = vset.pattern.permute.xlu0 0
    %113 = vperm.xlu0 %112, %v35
    %v114 = vpop.permute.xlu0 %113
    %117 = vset.pattern.permute.xlu0 0
    %118 = vperm.xlu0 %117, %v36
    %v119 = vpop.permute.xlu0 %118
    %122 = vset.pattern.permute.xlu0 0
    %123 = vperm.xlu0 %122, %v37
    %v124 = vpop.permute.xlu0 %123
    %127 = vset.pattern.permute.xlu0 0
    %128 = vperm.xlu0 %127, %v38
    %v129 = vpop.permute.xlu0 %128
    %132 = vset.pattern.permute.xlu0 0
    %133 = vperm.xlu0 %132, %v39
    %v134 = vpop.permute.xlu0 %133
    %v136 = vlaneseq
    %v137 = vshrl.u32 %v136, 7
    %v138 = vsub.s32 0, %v137
    %v139 = vrot.slane %v23, %v138
    %v140 = vmul.f32 %v59, %v139
    %v141 = vmul.f32 %v64, %v139
    %v142 = vmul.f32 %v69, %v139
    %v143 = vmul.f32 %v74, %v139
    %v144 = vmul.f32 %v79, %v139
    %v145 = vmul.f32 %v84, %v139
    %v146 = vmul.f32 %v89, %v139
    %v147 = vmul.f32 %v94, %v139
    %v148 = vmul.f32 %v99, %v139
    %v149 = vmul.f32 %v104, %v139
    %v150 = vmul.f32 %v109, %v139
    %v151 = vmul.f32 %v114, %v139
    %v152 = vmul.f32 %v119, %v139
    %v153 = vmul.f32 %v124, %v139
    %v154 = vmul.f32 %v129, %v139
    %v155 = vmul.f32 %v134, %v139
    %157 = vset.pattern.permute.xlu0 0
    %158 = vperm.xlu0 %157, %v40
    %v159 = vpop.permute.xlu0 %158
    %162 = vset.pattern.permute.xlu0 0
    %163 = vperm.xlu0 %162, %v41
    %v164 = vpop.permute.xlu0 %163
    %167 = vset.pattern.permute.xlu0 0
    %168 = vperm.xlu0 %167, %v42
    %v169 = vpop.permute.xlu0 %168
    %172 = vset.pattern.permute.xlu0 0
    %173 = vperm.xlu0 %172, %v43
    %v174 = vpop.permute.xlu0 %173
    %177 = vset.pattern.permute.xlu0 0
    %178 = vperm.xlu0 %177, %v44
    %v179 = vpop.permute.xlu0 %178
    %182 = vset.pattern.permute.xlu0 0
    %183 = vperm.xlu0 %182, %v45
    %v184 = vpop.permute.xlu0 %183
    %187 = vset.pattern.permute.xlu0 0
    %188 = vperm.xlu0 %187, %v46
    %v189 = vpop.permute.xlu0 %188
    %192 = vset.pattern.permute.xlu0 0
    %193 = vperm.xlu0 %192, %v47
    %v194 = vpop.permute.xlu0 %193
    %197 = vset.pattern.permute.xlu0 0
    %198 = vperm.xlu0 %197, %v48
    %v199 = vpop.permute.xlu0 %198
    %202 = vset.pattern.permute.xlu0 0
    %203 = vperm.xlu0 %202, %v49
    %v204 = vpop.permute.xlu0 %203
    %207 = vset.pattern.permute.xlu0 0
    %208 = vperm.xlu0 %207, %v50
    %v209 = vpop.permute.xlu0 %208
    %212 = vset.pattern.permute.xlu0 0
    %213 = vperm.xlu0 %212, %v51
    %v214 = vpop.permute.xlu0 %213
    %217 = vset.pattern.permute.xlu0 0
    %218 = vperm.xlu0 %217, %v52
    %v219 = vpop.permute.xlu0 %218
    %222 = vset.pattern.permute.xlu0 0
    %223 = vperm.xlu0 %222, %v53
    %v224 = vpop.permute.xlu0 %223
    %227 = vset.pattern.permute.xlu0 0
    %228 = vperm.xlu0 %227, %v54
    %v229 = vpop.permute.xlu0 %228
    %232 = vset.pattern.permute.xlu0 0
    %233 = vperm.xlu0 %232, %v55
    %v234 = vpop.permute.xlu0 %233
    %v236 = vadd.f32 %v159, %v140
    %v237 = vadd.f32 %v164, %v141
    %v238 = vadd.f32 %v169, %v142
    %v239 = vadd.f32 %v174, %v143
    %v240 = vadd.f32 %v179, %v144
    %v241 = vadd.f32 %v184, %v145
    %v242 = vadd.f32 %v189, %v146
    %v243 = vadd.f32 %v194, %v147
    %v244 = vadd.f32 %v199, %v148
    %v245 = vadd.f32 %v204, %v149
    %v246 = vadd.f32 %v209, %v150
    %v247 = vadd.f32 %v214, %v151
    %v248 = vadd.f32 %v219, %v152
    %v249 = vadd.f32 %v224, %v153
    %v250 = vadd.f32 %v229, %v154
    %v251 = vadd.f32 %v234, %v155
    %252 = vset.pattern.permute.xlu0 1
    %253 = vperm.xlu0 %252, %v24
    %v254 = vpop.permute.xlu0 %253
    %256 = vset.pattern.permute.xlu0 1
    %257 = vperm.xlu0 %256, %v25
    %v258 = vpop.permute.xlu0 %257
    %260 = vset.pattern.permute.xlu0 1
    %261 = vperm.xlu0 %260, %v26
    %v262 = vpop.permute.xlu0 %261
    %264 = vset.pattern.permute.xlu0 1
    %265 = vperm.xlu0 %264, %v27
    %v266 = vpop.permute.xlu0 %265
    %268 = vset.pattern.permute.xlu0 1
    %269 = vperm.xlu0 %268, %v28
    %v270 = vpop.permute.xlu0 %269
    %272 = vset.pattern.permute.xlu0 1
    %273 = vperm.xlu0 %272, %v29
    %v274 = vpop.permute.xlu0 %273
    %276 = vset.pattern.permute.xlu0 1
    %277 = vperm.xlu0 %276, %v30
    %v278 = vpop.permute.xlu0 %277
    %280 = vset.pattern.permute.xlu0 1
    %281 = vperm.xlu0 %280, %v31
    %v282 = vpop.permute.xlu0 %281
    %284 = vset.pattern.permute.xlu0 1
    %285 = vperm.xlu0 %284, %v32
    %v286 = vpop.permute.xlu0 %285
    %288 = vset.pattern.permute.xlu0 1
    %289 = vperm.xlu0 %288, %v33
    %v290 = vpop.permute.xlu0 %289
    %292 = vset.pattern.permute.xlu0 1
    %293 = vperm.xlu0 %292, %v34
    %v294 = vpop.permute.xlu0 %293
    %296 = vset.pattern.permute.xlu0 1
    %297 = vperm.xlu0 %296, %v35
    %v298 = vpop.permute.xlu0 %297
    %300 = vset.pattern.permute.xlu0 1
    %301 = vperm.xlu0 %300, %v36
    %v302 = vpop.permute.xlu0 %301
    %304 = vset.pattern.permute.xlu0 1
    %305 = vperm.xlu0 %304, %v37
    %v306 = vpop.permute.xlu0 %305
    %308 = vset.pattern.permute.xlu0 1
    %309 = vperm.xlu0 %308, %v38
    %v310 = vpop.permute.xlu0 %309
    %312 = vset.pattern.permute.xlu0 1
    %313 = vperm.xlu0 %312, %v39
    %v314 = vpop.permute.xlu0 %313
    %v316 = vlaneseq
    %v317 = vshrl.u32 %v316, 7
    %v318 = vsub.s32 1, %v317
    %v319 = vrot.slane %v23, %v318
    %v320 = vmul.f32 %v254, %v319
    %v321 = vmul.f32 %v258, %v319
    %v322 = vmul.f32 %v262, %v319
    %v323 = vmul.f32 %v266, %v319
    %v324 = vmul.f32 %v270, %v319
    %v325 = vmul.f32 %v274, %v319
    %v326 = vmul.f32 %v278, %v319
    %v327 = vmul.f32 %v282, %v319
    %v328 = vmul.f32 %v286, %v319
    %v329 = vmul.f32 %v290, %v319
    %v330 = vmul.f32 %v294, %v319
    %v331 = vmul.f32 %v298, %v319
    %v332 = vmul.f32 %v302, %v319
    %v333 = vmul.f32 %v306, %v319
    %v334 = vmul.f32 %v310, %v319
    %v335 = vmul.f32 %v314, %v319
    %v336 = vadd.f32 %v236, %v320
    %v337 = vadd.f32 %v237, %v321
    %v338 = vadd.f32 %v238, %v322
    %v339 = vadd.f32 %v239, %v323
    %v340 = vadd.f32 %v240, %v324
    %v341 = vadd.f32 %v241, %v325
    %v342 = vadd.f32 %v242, %v326
    %v343 = vadd.f32 %v243, %v327
    %v344 = vadd.f32 %v244, %v328
    %v345 = vadd.f32 %v245, %v329
    %v346 = vadd.f32 %v246, %v330
    %v347 = vadd.f32 %v247, %v331
    %v348 = vadd.f32 %v248, %v332
    %v349 = vadd.f32 %v249, %v333
    %v350 = vadd.f32 %v250, %v334
    %v351 = vadd.f32 %v251, %v335
    %352 = vset.pattern.permute.xlu0 2
    %353 = vperm.xlu0 %352, %v24
    %v354 = vpop.permute.xlu0 %353
    %356 = vset.pattern.permute.xlu0 2
    %357 = vperm.xlu0 %356, %v25
    %v358 = vpop.permute.xlu0 %357
    %360 = vset.pattern.permute.xlu0 2
    %361 = vperm.xlu0 %360, %v26
    %v362 = vpop.permute.xlu0 %361
    %364 = vset.pattern.permute.xlu0 2
    %365 = vperm.xlu0 %364, %v27
    %v366 = vpop.permute.xlu0 %365
    %368 = vset.pattern.permute.xlu0 2
    %369 = vperm.xlu0 %368, %v28
    %v370 = vpop.permute.xlu0 %369
    %372 = vset.pattern.permute.xlu0 2
    %373 = vperm.xlu0 %372, %v29
    %v374 = vpop.permute.xlu0 %373
    %376 = vset.pattern.permute.xlu0 2
    %377 = vperm.xlu0 %376, %v30
    %v378 = vpop.permute.xlu0 %377
    %380 = vset.pattern.permute.xlu0 2
    %381 = vperm.xlu0 %380, %v31
    %v382 = vpop.permute.xlu0 %381
    %384 = vset.pattern.permute.xlu0 2
    %385 = vperm.xlu0 %384, %v32
    %v386 = vpop.permute.xlu0 %385
    %388 = vset.pattern.permute.xlu0 2
    %389 = vperm.xlu0 %388, %v33
    %v390 = vpop.permute.xlu0 %389
    %392 = vset.pattern.permute.xlu0 2
    %393 = vperm.xlu0 %392, %v34
    %v394 = vpop.permute.xlu0 %393
    %396 = vset.pattern.permute.xlu0 2
    %397 = vperm.xlu0 %396, %v35
    %v398 = vpop.permute.xlu0 %397
    %400 = vset.pattern.permute.xlu0 2
    %401 = vperm.xlu0 %400, %v36
    %v402 = vpop.permute.xlu0 %401
    %404 = vset.pattern.permute.xlu0 2
    %405 = vperm.xlu0 %404, %v37
    %v406 = vpop.permute.xlu0 %405
    %408 = vset.pattern.permute.xlu0 2
    %409 = vperm.xlu0 %408, %v38
    %v410 = vpop.permute.xlu0 %409
    %412 = vset.pattern.permute.xlu0 2
    %413 = vperm.xlu0 %412, %v39
    %v414 = vpop.permute.xlu0 %413
    %v416 = vlaneseq
    %v417 = vshrl.u32 %v416, 7
    %v418 = vsub.s32 2, %v417
    %v419 = vrot.slane %v23, %v418
    %v420 = vmul.f32 %v354, %v419
    %v421 = vmul.f32 %v358, %v419
    %v422 = vmul.f32 %v362, %v419
    %v423 = vmul.f32 %v366, %v419
    %v424 = vmul.f32 %v370, %v419
    %v425 = vmul.f32 %v374, %v419
    %v426 = vmul.f32 %v378, %v419
    %v427 = vmul.f32 %v382, %v419
    %v428 = vmul.f32 %v386, %v419
    %v429 = vmul.f32 %v390, %v419
    %v430 = vmul.f32 %v394, %v419
    %v431 = vmul.f32 %v398, %v419
    %v432 = vmul.f32 %v402, %v419
    %v433 = vmul.f32 %v406, %v419
    %v434 = vmul.f32 %v410, %v419
    %v435 = vmul.f32 %v414, %v419
    %v436 = vadd.f32 %v336, %v420
    %v437 = vadd.f32 %v337, %v421
    %v438 = vadd.f32 %v338, %v422
    %v439 = vadd.f32 %v339, %v423
    %v440 = vadd.f32 %v340, %v424
    %v441 = vadd.f32 %v341, %v425
    %v442 = vadd.f32 %v342, %v426
    %v443 = vadd.f32 %v343, %v427
    %v444 = vadd.f32 %v344, %v428
    %v445 = vadd.f32 %v345, %v429
    %v446 = vadd.f32 %v346, %v430
    %v447 = vadd.f32 %v347, %v431
    %v448 = vadd.f32 %v348, %v432
    %v449 = vadd.f32 %v349, %v433
    %v450 = vadd.f32 %v350, %v434
    %v451 = vadd.f32 %v351, %v435
    %452 = vset.pattern.permute.xlu0 3
    %453 = vperm.xlu0 %452, %v24
    %v454 = vpop.permute.xlu0 %453
    %456 = vset.pattern.permute.xlu0 3
    %457 = vperm.xlu0 %456, %v25
    %v458 = vpop.permute.xlu0 %457
    %460 = vset.pattern.permute.xlu0 3
    %461 = vperm.xlu0 %460, %v26
    %v462 = vpop.permute.xlu0 %461
    %464 = vset.pattern.permute.xlu0 3
    %465 = vperm.xlu0 %464, %v27
    %v466 = vpop.permute.xlu0 %465
    %468 = vset.pattern.permute.xlu0 3
    %469 = vperm.xlu0 %468, %v28
    %v470 = vpop.permute.xlu0 %469
    %472 = vset.pattern.permute.xlu0 3
    %473 = vperm.xlu0 %472, %v29
    %v474 = vpop.permute.xlu0 %473
    %476 = vset.pattern.permute.xlu0 3
    %477 = vperm.xlu0 %476, %v30
    %v478 = vpop.permute.xlu0 %477
    %480 = vset.pattern.permute.xlu0 3
    %481 = vperm.xlu0 %480, %v31
    %v482 = vpop.permute.xlu0 %481
    %484 = vset.pattern.permute.xlu0 3
    %485 = vperm.xlu0 %484, %v32
    %v486 = vpop.permute.xlu0 %485
    %488 = vset.pattern.permute.xlu0 3
    %489 = vperm.xlu0 %488, %v33
    %v490 = vpop.permute.xlu0 %489
    %492 = vset.pattern.permute.xlu0 3
    %493 = vperm.xlu0 %492, %v34
    %v494 = vpop.permute.xlu0 %493
    %496 = vset.pattern.permute.xlu0 3
    %497 = vperm.xlu0 %496, %v35
    %v498 = vpop.permute.xlu0 %497
    %500 = vset.pattern.permute.xlu0 3
    %501 = vperm.xlu0 %500, %v36
    %v502 = vpop.permute.xlu0 %501
    %504 = vset.pattern.permute.xlu0 3
    %505 = vperm.xlu0 %504, %v37
    %v506 = vpop.permute.xlu0 %505
    %508 = vset.pattern.permute.xlu0 3
    %509 = vperm.xlu0 %508, %v38
    %v510 = vpop.permute.xlu0 %509
    %512 = vset.pattern.permute.xlu0 3
    %513 = vperm.xlu0 %512, %v39
    %v514 = vpop.permute.xlu0 %513
    %v516 = vlaneseq
    %v517 = vshrl.u32 %v516, 7
    %v518 = vsub.s32 3, %v517
    %v519 = vrot.slane %v23, %v518
    %v520 = vmul.f32 %v454, %v519
    %v521 = vmul.f32 %v458, %v519
    %v522 = vmul.f32 %v462, %v519
    %v523 = vmul.f32 %v466, %v519
    %v524 = vmul.f32 %v470, %v519
    %v525 = vmul.f32 %v474, %v519
    %v526 = vmul.f32 %v478, %v519
    %v527 = vmul.f32 %v482, %v519
    %v528 = vmul.f32 %v486, %v519
    %v529 = vmul.f32 %v490, %v519
    %v530 = vmul.f32 %v494, %v519
    %v531 = vmul.f32 %v498, %v519
    %v532 = vmul.f32 %v502, %v519
    %v533 = vmul.f32 %v506, %v519
    %v534 = vmul.f32 %v510, %v519
    %v535 = vmul.f32 %v514, %v519
    %v536 = vadd.f32 %v436, %v520
    %v537 = vadd.f32 %v437, %v521
    %v538 = vadd.f32 %v438, %v522
    %v539 = vadd.f32 %v439, %v523
    %v540 = vadd.f32 %v440, %v524
    %v541 = vadd.f32 %v441, %v525
    %v542 = vadd.f32 %v442, %v526
    %v543 = vadd.f32 %v443, %v527
    %v544 = vadd.f32 %v444, %v528
    %v545 = vadd.f32 %v445, %v529
    %v546 = vadd.f32 %v446, %v530
    %v547 = vadd.f32 %v447, %v531
    %v548 = vadd.f32 %v448, %v532
    %v549 = vadd.f32 %v449, %v533
    %v550 = vadd.f32 %v450, %v534
    %v551 = vadd.f32 %v451, %v535
    %v552 = vmax.f32 %v536, 0.0
    %v553 = vmax.f32 %v537, 0.0
    %v554 = vmax.f32 %v538, 0.0
    %v555 = vmax.f32 %v539, 0.0
    %v556 = vmax.f32 %v540, 0.0
    %v557 = vmax.f32 %v541, 0.0
    %v558 = vmax.f32 %v542, 0.0
    %v559 = vmax.f32 %v543, 0.0
    %v560 = vmax.f32 %v544, 0.0
    %v561 = vmax.f32 %v545, 0.0
    %v562 = vmax.f32 %v546, 0.0
    %v563 = vmax.f32 %v547, 0.0
    %v564 = vmax.f32 %v548, 0.0
    %v565 = vmax.f32 %v549, 0.0
    %v566 = vmax.f32 %v550, 0.0
    %v567 = vmax.f32 %v551, 0.0
    %v568 = vld [vmem:[%s3] sm:$0x1]
    %v569 = vld [vmem:[#allocation2] sm:$0x1]
    %571 = vset.pattern.permute.xlu0 0
    %572 = vperm.xlu0 %571, %v569
    %v573 = vpop.permute.xlu0 %572
    %v575 = vlaneseq
    %v576 = vshrl.u32 %v575, 7
    %v577 = vsub.s32 0, %v576
    %v578 = vrot.slane %v573, %v577
    %579 = vmatprep.subr.mxu0 0.0
    %580 = vmatpush1.msra.mxu0 %v567
    %581 = vmatprep.subr.mxu0 0.0
    %582 = vmatpush1.msra.mxu0 %v566
    %583 = vmatprep.subr.mxu0 0.0
    %584 = vmatpush1.msra.mxu0 %v565
    %585 = vmatprep.subr.mxu0 0.0
    %586 = vmatpush1.msra.mxu0 %v564
    %587 = vmatprep.subr.mxu0 0.0
    %588 = vmatpush1.msra.mxu0 %v563
    %589 = vmatprep.subr.mxu0 0.0
    %590 = vmatpush1.msra.mxu0 %v562
    %591 = vmatprep.subr.mxu0 0.0
    %592 = vmatpush1.msra.mxu0 %v561
    %593 = vmatprep.subr.mxu0 0.0
    %594 = vmatpush1.msra.mxu0 %v560
    %595 = vmatprep.subr.mxu0 0.0
    %596 = vmatpush1.msra.mxu0 %v559
    %597 = vmatprep.subr.mxu0 0.0
    %598 = vmatpush1.msra.mxu0 %v558
    %599 = vmatprep.subr.mxu0 0.0
    %600 = vmatpush1.msra.mxu0 %v557
    %601 = vmatprep.subr.mxu0 0.0
    %602 = vmatpush1.msra.mxu0 %v556
    %603 = vmatprep.subr.mxu0 0.0
    %604 = vmatpush1.msra.mxu0 %v555
    %605 = vmatprep.subr.mxu0 0.0
    %606 = vmatpush1.msra.mxu0 %v554
    %607 = vmatprep.subr.mxu0 0.0
    %608 = vmatpush1.msra.mxu0 %v553
    %609 = vmatprep.subr.mxu0 0.0
    %610 = vmatpush1.msra.mxu0 %v552
    %611 = vmatprep.subr.mxu0 0.0
    %612 = vmatpush2.msra.mxu0 0.0
    %613 = vmatprep.subr.mxu0 0.0
    %614 = vmatpush2.msra.mxu0 0.0
    %615 = vmatprep.subr.mxu0 0.0
    %616 = vmatpush2.msra.mxu0 0.0
    %617 = vmatprep.subr.mxu0 0.0
    %618 = vmatpush2.msra.mxu0 0.0
    %619 = vmatprep.subr.mxu0 0.0
    %620 = vmatpush2.msra.mxu0 0.0
    %621 = vmatprep.subr.mxu0 0.0
    %622 = vmatpush2.msra.mxu0 0.0
    %623 = vmatprep.subr.mxu0 0.0
    %624 = vmatpush2.msra.mxu0 0.0
    %625 = vmatprep.subr.mxu0 0.0
    %626 = vmatpush2.msra.mxu0 0.0
    %627 = vmatprep.subr.mxu0 0.0
    %628 = vmatpush2.msra.mxu0 0.0
    %629 = vmatprep.subr.mxu0 0.0
    %630 = vmatpush2.msra.mxu0 0.0
    %631 = vmatprep.subr.mxu0 0.0
    %632 = vmatpush2.msra.mxu0 0.0
    %633 = vmatprep.subr.mxu0 0.0
    %634 = vmatpush2.msra.mxu0 0.0
    %635 = vmatprep.subr.mxu0 0.0
    %636 = vmatpush2.msra.mxu0 0.0
    %637 = vmatprep.subr.mxu0 0.0
    %638 = vmatpush2.msra.mxu0 0.0
    %639 = vmatprep.subr.mxu0 0.0
    %640 = vmatpush2.msra.mxu0 0.0
    %641 = vmatprep.subr.mxu0 0.0
    %642 = vmatpush2.msra.mxu0 0.0
    %643 = vmatprep.mubr.f32.mxu0 0.0
    %644 = vmatmul.mubr.f32.gmra.mxu0 %v568
    %v645 = vpop.f32.mrf.mxu0
    %v646 = vadd.f32 %v578, %v645
    %v647 = vpop.f32.mrf.mxu0
    %648 = vdwg.mxu0
    %v649 = vsub.f32 0.0, %v646
    %v650 = vmul.f32 %v649, 1.442695
    %v651 = vpow.pop %v650
    %v652 = vadd.f32 %v651, 1.0
    %v653 = vrcp.pop %v652
    %v654 = vmul.f32 1.0, %v653
    %v655 = vsub.f32 1.0, %v654
    %v656 = vlaneseq
    %v657 = vshrl.u32 %v656, 7
    %vm658 = vcmp.eq.s32.totalorder %v657, 0
    %v659 = vlaneseq
    %v660 = vshrl.u32 %v659, 7
    %v661 = vsub.s32 0, %v660
    %v662 = vrot.slane %v655, %v661
    %v663 = vlaneseq
    %v664 = vshrl.u32 %v663, 7
    %v665 = vsub.s32 0, %v664
    %v666 = vrot.slane %v654, %v665
    %v667 = vsel %vm658, %v662, %v666
    %vm668 = vcmask 58368
    %669 = vst.msk [vmem:[#allocation3] sm:$0x3] %vm668, %v667
    // Predicated region
    $region22: #{tpu_custom_call.1} parent=1 // pred_check
      _
    $region23: #{tpu_custom_call.1} parent=1 // pred_check_branch
      %671 = sbr.rel (0) target = $region25
    $region24: #{tpu_custom_call.1} parent=1 // pred_region
      %s673 = ssub.s32 32, 32
      %674 = vsyncadd [#allocation4], %s673
      %s676 = sshll.u32 [#allocation3], 4
      %s677 = int_to_ptr.vmem [resolvable:$true] %s676
      %679 = dma.vmem_to_hbm [thread:$0]  %s677, 32, %s5, [#allocation4]
    $region25: #{tpu_custom_call.1} parent=1 // pred_fallthru
      _
    // Predicated region
    $region26: #{tpu_custom_call.1} parent=1 // pred_check
      _
    $region27: #{tpu_custom_call.1} parent=1 // pred_check_branch
      %681 = sbr.rel (0) target = $region29
    $region28: #{tpu_custom_call.1} parent=1 // pred_region
      %682 = dma.done [#allocation4], 32
    $region29: #{tpu_custom_call.1} parent=1 // pred_fallthru
      _
    %683 = vsyncpa [#allocation4], 1

</llo_original>
